<compile_context>
chip_gen: v7x
topology: tpu7x:2x2x1
jax: 0.10.0
libtpu: 0.0.40
codegen_flags: <defaults>
</compile_context>

<pallas_src>
import functools

import jax
import jax.numpy as jnp
from jax.experimental import pallas as pl
from jax.experimental.pallas import tpu as pltpu

BN_EPS = 1e-5
LANE = 128


# ----------------------------- chip detection ---------------------------------

def _detect_vmem_bytes(default=64 << 20):
    try:
        info = pltpu.get_tpu_info()
        for name in ("vmem_capacity_bytes", "vmem_size_bytes", "vmem_bytes"):
            v = getattr(info, name, None)
            if v:
                return int(v)
    except Exception:
        pass
    return default


_VMEM_CAP = _detect_vmem_bytes()
_BIG_VMEM = _VMEM_CAP >= (96 << 20)          # v5e/v6e: 128 MiB, v7x: 64 MiB
_ROW_CAP = 1024 if _BIG_VMEM else 512
_MOSAIC_EXTRA = {"vmem_limit_bytes": 96 << 20} if _BIG_VMEM else {}


def _cparams(dims):
    return pltpu.CompilerParams(dimension_semantics=dims, **_MOSAIC_EXTRA)


# ----------------------------- helpers ---------------------------------------

def _round_up(x, m):
    return ((x + m - 1) // m) * m


def _cp(c):
    """Pad a channel count up to a multiple of 128 lanes."""
    return _round_up(max(int(c), 1), LANE)


def _pick_tile(rows, cap):
    """Row tile: full rows when small; else largest multiple-of-8 divisor <= cap;
    else a ragged multiple-of-8 tile (grid uses pl.cdiv, Pallas masks tail)."""
    if rows <= cap:
        return rows
    t = (cap // 8) * 8
    while t >= 8:
        if rows % t == 0:
            return t
        t -= 8
    return (cap // 8) * 8


def _pick_strip(rows, cap):
    """Output-row strip for the depthwise kernel: a divisor of `rows`."""
    if rows <= cap:
        return rows
    for t in range(cap, 3, -1):
        if rows % t == 0:
            return t
    return rows


def _apply_act(y, act):
    if act == "hardswish":
        return y * jnp.clip(y + 3.0, 0.0, 6.0) * (1.0 / 6.0)
    if act == "relu6":
        return jnp.clip(y, 0.0, 6.0)
    if act == "relu":
        return jnp.maximum(y, 0.0)
    if act == "hardsigmoid":
        return jnp.clip(y * (1.0 / 6.0) + 0.5, 0.0, 1.0)
    return y  # 'none'


# ----------------------------- pointwise / matmul kernel ----------------------

def _pw_kernel(*refs, act, has_se, has_res):
    """Fused (optional SE-scale) -> matmul -> BN -> act -> (optional residual)."""
    idx = 0
    x_ref = refs[idx]; idx += 1
    se_ref = None
    if has_se:
        se_ref = refs[idx]; idx += 1
    w_ref = refs[idx]
    s_ref = refs[idx + 1]
    b_ref = refs[idx + 2]
    idx += 3
    r_ref = refs[idx] if has_res else None
    o_ref = refs[-1]

    xb = x_ref[0]                                    # (TR, K) bf16
    if has_se:
        xb = xb * se_ref[0]                          # bf16 gate, no f32 round trip
    y = jnp.dot(xb, w_ref[...], preferred_element_type=jnp.float32)
    y = y * s_ref[...] + b_ref[...]
    y = _apply_act(y, act)
    if has_res:
        y = y + r_ref[0].astype(jnp.float32)
    o_ref[0] = y.astype(o_ref.dtype)


def matmul_rows(x, w, scale, bias, act="none", se=None, resid=None,
                out_dtype=jnp.bfloat16, row_cap=None):
    """x:(N,R,K) w:(K,Cout) scale/bias:(1,Cout) se:(N,1,K)? resid:(N,R,Cout)?"""
    if row_cap is None:
        row_cap = _ROW_CAP
    N0, R0, K = x.shape
    Cout = w.shape[1]

    # Batch-collapse into the row dim when there is no per-batch SE gate:
    # one big MXU matmul instead of N grid steps on small-spatial layers.
    collapse = (se is None) and (N0 > 1)
    if collapse:
        x = x.reshape(1, N0 * R0, K)
        if resid is not None:
            resid = resid.reshape(1, N0 * R0, resid.shape[-1])

    N, R = x.shape[0], x.shape[1]
    TR = _pick_tile(R, row_cap)
    grid = (N, pl.cdiv(R, TR))

    in_specs = [pl.BlockSpec((1, TR, K), lambda n, r: (n, r, 0))]
    operands = [x.astype(jnp.bfloat16)]
    if se is not None:
        in_specs.append(pl.BlockSpec((1, 1, K), lambda n, r: (n, 0, 0)))
        operands.append(se.astype(jnp.bfloat16))
    in_specs += [
        pl.BlockSpec((K, Cout), lambda n, r: (0, 0)),
        pl.BlockSpec((1, Cout), lambda n, r: (0, 0)),
        pl.BlockSpec((1, Cout), lambda n, r: (0, 0)),
    ]
    operands += [w, scale, bias]
    if resid is not None:
        in_specs.append(pl.BlockSpec((1, TR, Cout), lambda n, r: (n, r, 0)))
        operands.append(resid)

    out = pl.pallas_call(
        functools.partial(_pw_kernel, act=act, has_se=se is not None,
                          has_res=resid is not None),
        out_shape=jax.ShapeDtypeStruct((N, R, Cout), out_dtype),
        grid=grid,
        in_specs=in_specs,
        out_specs=pl.BlockSpec((1, TR, Cout), lambda n, r: (n, r, 0)),
        compiler_params=_cparams(("parallel", "parallel")),
    )(*operands)
    if collapse:
        out = out.reshape(N0, R0, Cout)
    return out


# ----------------------------- depthwise conv kernel --------------------------

def _dw_kernel(x_ref, w_ref, s_ref, b_ref, o_ref, pool_ref, xpad_ref, *ph,
               K, stride, TH, Ho, Wo, H, W, pad, PH, PW, act):
    """Depthwise KxK conv + BN + act, processed in output-row strips.

    The spatial halo pad and (for stride>1) the phase decomposition are built
    once per (batch, channel-tile) in VMEM scratch from the resident input
    block - no XLA-side pad / phase-slab HBM traffic.  The SE global-average
    pool is emitted as a second (accumulator) output.
    """
    ph_ref = ph[0] if stride > 1 else None
    hs = pl.program_id(2)

    @pl.when(hs == 0)
    def _():
        xpad_ref[...] = jnp.zeros(xpad_ref.shape, xpad_ref.dtype)
        xpad_ref[pad:pad + H, pad:pad + W, :] = x_ref[0]
        if stride > 1:
            for a in range(stride):
                for b in range(stride):
                    ph_ref[a * stride + b] = xpad_ref[
                        pl.ds(a, PH, stride=stride),
                        pl.ds(b, PW, stride=stride), :]
        pool_ref[...] = jnp.zeros(pool_ref.shape, pool_ref.dtype)

    r0 = hs * TH
    TC = o_ref.shape[-1]
    acc = jnp.zeros((TH, Wo, TC), jnp.float32)
    for kh in range(K):
        for kw in range(K):
            if stride == 1:
                win = xpad_ref[pl.ds(r0 + kh, TH), pl.ds(kw, Wo), :]
            else:
                p = (kh % stride) * stride + (kw % stride)
                win = ph_ref[p, pl.ds(r0 + kh // stride, TH),
                             pl.ds(kw // stride, Wo), :]
            acc = acc + win.astype(jnp.float32) * w_ref[kh * K + kw]
    y = acc * s_ref[...] + b_ref[...]
    y = _apply_act(y, act)
    o_ref[0] = y.astype(o_ref.dtype)

    # SE global-average-pool partial sums (free filler on data already live).
    ps = jnp.sum(y, axis=0, keepdims=True)
    ps = jnp.sum(ps, axis=1, keepdims=True)          # (1, 1, TC)
    pool_ref[...] = pool_ref[...] + ps


def depthwise_bn_act(x, w_kkc, scale, bias, stride, K, act, th_cap=16):
    """x:(N,H,W,C) bf16 -> (y:(N,Ho,Wo,C) bf16, pool_sums:(N,1,C) f32)."""
    N, H, W, C = x.shape
    pad = (K - 1) // 2
    Hp, Wp = H + 2 * pad, W + 2 * pad
    Ho = (Hp - K) // stride + 1
    Wo = (Wp - K) // stride + 1
    PH = (K - 1) // stride + Ho
    PW = (K - 1) // stride + Wo
    HPA = max(Hp, PH * stride)                       # slack for strided phase reads
    WPA = max(Wp, PW * stride)
    S2 = stride * stride

    TC = min(C, LANE)                                # C is a multiple of 128
    TH = _pick_strip(Ho, th_cap)
    HS = Ho // TH

    scratch = [pltpu.VMEM((HPA, WPA, TC), jnp.bfloat16)]
    if stride > 1:
        scratch.append(pltpu.VMEM((S2, PH, PW, TC), jnp.bfloat16))

    grid = (N, C // TC, HS)
    y, pool = pl.pallas_call(
        functools.partial(_dw_kernel, K=K, stride=stride, TH=TH, Ho=Ho, Wo=Wo,
                          H=H, W=W, pad=pad, PH=PH, PW=PW, act=act),
        out_shape=(jax.ShapeDtypeStruct((N, Ho, Wo, C), jnp.bfloat16),
                   jax.ShapeDtypeStruct((N, 1, C), jnp.float32)),
        grid=grid,
        in_specs=[
            pl.BlockSpec((1, H, W, TC), lambda n, c, h: (n, 0, 0, c)),
            pl.BlockSpec((K * K, 1, TC), lambda n, c, h: (0, 0, c)),
            pl.BlockSpec((1, TC), lambda n, c, h: (0, c)),
            pl.BlockSpec((1, TC), lambda n, c, h: (0, c)),
        ],
        out_specs=(
            pl.BlockSpec((1, TH, Wo, TC), lambda n, c, h: (n, h, 0, c)),
            pl.BlockSpec((1, 1, TC), lambda n, c, h: (n, 0, c)),
        ),
        scratch_shapes=scratch,
        compiler_params=_cparams(("parallel", "parallel", "arbitrary")),
    )(x, w_kkc, scale, bias)
    return y, pool


# ----------------------------- SE gate (fc part only) -------------------------

def _se_fc_kernel(p_ref, w1_ref, b1_ref, w2_ref, b2_ref, o_ref, *, inv_hw):
    pooled = p_ref[0] * inv_hw                       # (N, C) f32 mean
    h = jnp.dot(pooled.astype(jnp.bfloat16), w1_ref[...],
                preferred_element_type=jnp.float32) + b1_ref[...]
    h = jnp.maximum(h, 0.0)
    g = jnp.dot(h.astype(jnp.bfloat16), w2_ref[...],
                preferred_element_type=jnp.float32) + b2_ref[...]
    o_ref[0] = _apply_act(g, "hardsigmoid").astype(o_ref.dtype)


def se_fc(pool_sums, w1, b1, w2, b2, inv_hw):
    """pool_sums:(N,1,Cp) f32 spatial sums -> SE gate (N,1,Cp) bf16.
    Whole batch handled in one tiny kernel (no grid)."""
    N, _, Cp = pool_sums.shape
    gate = pl.pallas_call(
        functools.partial(_se_fc_kernel, inv_hw=inv_hw),
        out_shape=jax.ShapeDtypeStruct((1, N, Cp), jnp.bfloat16),
    )(pool_sums.reshape(1, N, Cp), w1, b1, w2, b2)
    return gate.reshape(N, 1, Cp)


# ----------------------------- global average pool ----------------------------

def _pool_kernel(x_ref, o_ref, *, inv_hw):
    o_ref[0] = jnp.sum(x_ref[0].astype(jnp.float32), axis=0, keepdims=True) * inv_hw


def global_avg_pool(x_nhwc):
    N, H, W, C = x_nhwc.shape
    x3 = x_nhwc.reshape(N, H * W, C)
    return pl.pallas_call(
        functools.partial(_pool_kernel, inv_hw=1.0 / (H * W)),
        out_shape=jax.ShapeDtypeStruct((N, 1, C), jnp.float32),
        grid=(N,),
        in_specs=[pl.BlockSpec((1, H * W, C), lambda n: (n, 0, 0))],
        out_specs=pl.BlockSpec((1, 1, C), lambda n: (n, 0, 0)),
        compiler_params=_cparams(("parallel",)),
    )(x3)


# ----------------------------- stem glue ---------------------------------------

def _stem_cols(x_nhwc, K, stride):
    """im2col only for the stem (3-channel input -> negligible volume)."""
    N, H, W, Cin = x_nhwc.shape
    pad = (K - 1) // 2
    xp = jnp.pad(x_nhwc, ((0, 0), (pad, pad), (pad, pad), (0, 0)))
    Ho = (H + 2 * pad - K) // stride + 1
    Wo = (W + 2 * pad - K) // stride + 1
    pats = [xp[:, kh:kh + stride * Ho:stride, kw:kw + stride * Wo:stride, :]
            for kh in range(K) for kw in range(K)]
    cols = jnp.stack(pats, axis=3).reshape(N, Ho * Wo, K * K * Cin)
    return cols, Ho, Wo


# ----------------------------- parameter init ---------------------------------

class _ParamGen:
    def __init__(self, seed=0):
        self.key = jax.random.PRNGKey(seed)

    def next(self):
        self.key, k = jax.random.split(self.key)
        return k


def _init_conv(pg, cout, cin_per_g, k):
    # kaiming_normal_(mode='fan_out'), fan_out = cout * k * k
    std = (2.0 / (cout * k * k)) ** 0.5
    return std * jax.random.normal(pg.next(), (cout, cin_per_g, k, k), jnp.float32)


def _init_linear(pg, cin, cout):
    w = 0.01 * jax.random.normal(pg.next(), (cout, cin), jnp.float32)
    b = jnp.zeros((cout,), jnp.float32)
    return w, b


def _fold_bn(c):
    # gamma=1, beta=0, running_mean=0, running_var=1 -> eval-mode fold (padded).
    s = jnp.zeros((1, _cp(c)), jnp.float32).at[:, :c].set(1.0 / (1.0 + BN_EPS) ** 0.5)
    b = jnp.zeros((1, _cp(c)), jnp.float32)
    return s, b


def _pw_weight(pg, cin, cout):
    w = _init_conv(pg, cout, cin, 1).reshape(cout, cin).T          # (cin, cout)
    w = jnp.pad(w, ((0, _cp(cin) - cin), (0, _cp(cout) - cout)))
    return w.astype(jnp.bfloat16)


def _stem_weight(pg, cout, cin, k):
    w = _init_conv(pg, cout, cin, k)
    w = w.transpose(2, 3, 1, 0).reshape(k * k * cin, cout)         # (K*K*cin, cout)
    w = jnp.pad(w, ((0, 0), (0, _cp(cout) - cout)))
    return w.astype(jnp.bfloat16)


def _dw_weight(pg, c, k):
    w = _init_conv(pg, c, 1, k).reshape(c, k * k).T                # (k*k, c)
    w = jnp.pad(w, ((0, 0), (0, _cp(c) - c)))
    return w.reshape(k * k, 1, _cp(c)).astype(jnp.float32)


def _linear_weight(pg, cin, cout):
    w, b = _init_linear(pg, cin, cout)
    wm = jnp.pad(w.T, ((0, _cp(cin) - cin), (0, _cp(cout) - cout))).astype(jnp.bfloat16)
    bm = jnp.pad(b, (0, _cp(cout) - cout)).reshape(1, -1)
    ones = jnp.ones((1, _cp(cout)), jnp.float32)
    return wm, ones, bm


def build_mobilenet_v3(config, input_channel=3, num_classes=1000, seed=0):
    pg = _ParamGen(seed)
    block_config = config["block_config"]
    bic = config.get("input_channel", 16)
    blc = config.get("output_channel", 1024)

    params = {
        "stem": {"w": _stem_weight(pg, bic, input_channel, 3), "bn": _fold_bn(bic)},
        "num_classes": num_classes,
    }
    blocks = []
    in_c = bic
    t = 1
    for (k, t, c, use_se, use_hs, s) in block_config:
        mid = int(round(in_c * t))
        blk = {"k": k, "t": t, "c": c, "use_se": use_se, "use_hs": use_hs,
               "s": s, "in_c": in_c, "mid": mid}
        if t != 1:
            blk["expand_w"] = _pw_weight(pg, in_c, mid)
            blk["expand_bn"] = _fold_bn(mid)
        blk["dw_w"] = _dw_weight(pg, mid, k)
        blk["dw_bn"] = _fold_bn(mid)
        if use_se:
            red = mid // 8
            w1, _, b1 = _linear_weight(pg, mid, red)
            w2, _, b2 = _linear_weight(pg, red, mid)
            blk["se"] = (w1, b1, w2, b2)
        blk["proj_w"] = _pw_weight(pg, mid, c)
        blk["proj_bn"] = _fold_bn(c)
        blocks.append(blk)
        in_c = c
    params["blocks"] = blocks

    head_c = in_c * t
    params["head_w"] = _pw_weight(pg, in_c, head_c)
    params["head_bn"] = _fold_bn(head_c)
    params["fc1"] = _linear_weight(pg, head_c, blc)
    params["fc2"] = _linear_weight(pg, blc, num_classes)
    return params


# ----------------------------- forward ----------------------------------------

def mobilenet_v3_forward(params, x_nchw):
    if x_nchw.ndim == 3:
        x_nchw = x_nchw[None]
    if x_nchw.ndim != 4:
        raise ValueError(f"Bad input shape {x_nchw.shape}")
    x = jnp.transpose(x_nchw, (0, 2, 3, 1)).astype(jnp.float32)    # NCHW -> NHWC
    N = x.shape[0]

    # stem: 3x3 stride-2 conv + BN + Hardswish
    cols, Ho, Wo = _stem_cols(x, 3, 2)
    sc, bi = params["stem"]["bn"]
    y = matmul_rows(cols, params["stem"]["w"], sc, bi, act="hardswish")
    x = y.reshape(N, Ho, Wo, y.shape[-1])

    for blk in params["blocks"]:
        act = "hardswish" if blk["use_hs"] else "relu6"
        inp = x
        if blk["t"] != 1:
            sc, bi = blk["expand_bn"]
            Nb, Hb, Wb, Cb = x.shape
            y = matmul_rows(x.reshape(Nb, Hb * Wb, Cb), blk["expand_w"], sc, bi, act)
            x = y.reshape(Nb, Hb, Wb, y.shape[-1])

        sc, bi = blk["dw_bn"]
        x, pool_sums = depthwise_bn_act(x, blk["dw_w"], sc, bi, blk["s"], blk["k"], act)

        se_vec = None
        if blk["use_se"]:
            w1, b1, w2, b2 = blk["se"]
            se_vec = se_fc(pool_sums, w1, b1, w2, b2,
                           1.0 / (x.shape[1] * x.shape[2]))         # (N,1,mid_p) bf16

        Nb, Hb, Wb, Cb = x.shape
        resid = None
        if blk["s"] == 1 and blk["in_c"] == blk["c"]:
            resid = inp.reshape(Nb, Hb * Wb, inp.shape[-1])
        sc, bi = blk["proj_bn"]
        y = matmul_rows(x.reshape(Nb, Hb * Wb, Cb), blk["proj_w"], sc, bi, "none",
                        se=se_vec, resid=resid)
        x = y.reshape(Nb, Hb, Wb, y.shape[-1])

    # head 1x1 conv + BN + Hardswish
    sc, bi = params["head_bn"]
    Nb, Hb, Wb, Cb = x.shape
    y = matmul_rows(x.reshape(Nb, Hb * Wb, Cb), params["head_w"], sc, bi, "hardswish")
    x = y.reshape(Nb, Hb, Wb, y.shape[-1])

    # global average pool + classifier (batch collapsed into rows)
    feat = global_avg_pool(x)                                       # (N, 1, head_p) f32
    w1, s1, b1 = params["fc1"]
    h = matmul_rows(feat, w1, s1, b1, "hardswish")
    # TODO(synk): nn.Dropout(0.2) is identity in eval mode; train-mode RNG dropout not reproduced.
    w2, s2, b2 = params["fc2"]
    out = matmul_rows(h, w2, s2, b2, "none", out_dtype=jnp.float32)
    return out[:, 0, :params["num_classes"]]


# ----------------------------- main -------------------------------------------

if __name__ == "__main__":
    config = {
        "input_channel": 16,
        "output_channel": 64,
        "block_config": [
            # k, expand_ratio t, out_c, use_se, use_hs, stride
            (3, 1, 16, True, False, 2),
            (3, 4, 24, False, False, 2),
            (3, 3, 24, False, True, 1),
        ],
    }
    params = build_mobilenet_v3(config, input_channel=3, num_classes=10, seed=0)

    key = jax.random.PRNGKey(0)
    x = jax.random.normal(key, (2, 3, 16, 16), jnp.float32)  # NCHW, like PyTorch
    out = mobilenet_v3_forward(params, x)
    out = jax.block_until_ready(out)
    assert out.shape == (2, 10), out.shape
    print("KERNEL_OK")
</pallas_src>

<mosaic_0001>
module attributes {stable_mosaic.version = 11 : i64} {
  func.func @_pw_kernel(%arg0: i32, %arg1: i32, %arg2: memref<1x128x27xbf16, #tpu.memory_space<vmem>>, %arg3: memref<27x128xbf16, #tpu.memory_space<vmem>>, %arg4: memref<1x128xf32, #tpu.memory_space<vmem>>, %arg5: memref<1x128xf32, #tpu.memory_space<vmem>>, %arg6: memref<1x128x128xbf16, #tpu.memory_space<vmem>>) attributes {dimension_semantics = [#tpu.dimension_semantics<parallel>, #tpu.dimension_semantics<parallel>], iteration_bounds = array<i64: 1, 1>, scalar_prefetch = 0 : i64, scratch_operands = 0 : i64, tpu.core_type = #tpu.core_type<tc>, window_params = [{transform_indices = @transform_0, window_bounds = array<i64: 1, 128, 27>}, {pipeline_mode = #tpu.pipeline_mode<synchronous>, transform_indices = @transform_1, window_bounds = array<i64: 27, 128>}, {pipeline_mode = #tpu.pipeline_mode<synchronous>, transform_indices = @transform_2, window_bounds = array<i64: 1, 128>}, {pipeline_mode = #tpu.pipeline_mode<synchronous>, transform_indices = @transform_3, window_bounds = array<i64: 1, 128>}, {transform_indices = @transform_4, window_bounds = array<i64: 1, 128, 128>}]} {
    %c0 = arith.constant 0 : index
    %c0_0 = arith.constant 0 : index
    %c0_1 = arith.constant 0 : index
    %0 = vector.load %arg2[%c0, %c0_0, %c0_1] : memref<1x128x27xbf16, #tpu.memory_space<vmem>>, vector<1x128x27xbf16>
    %1 = vector.shape_cast %0 : vector<1x128x27xbf16> to vector<128x27xbf16>
    %c0_2 = arith.constant 0 : index
    %c0_3 = arith.constant 0 : index
    %2 = vector.load %arg3[%c0_2, %c0_3] : memref<27x128xbf16, #tpu.memory_space<vmem>>, vector<27x128xbf16>
    %cst = arith.constant dense<0.000000e+00> : vector<128x128xf32>
    %3 = tpu.matmul %1, %2, %cst {dimension_numbers = #tpu.dot_dimension_numbers<[1], [0], [0], [1], [0, 0, 1, 1], [], []>} : vector<128x27xbf16>, vector<27x128xbf16>, vector<128x128xf32> -> vector<128x128xf32>
    %c0_4 = arith.constant 0 : index
    %c0_5 = arith.constant 0 : index
    %4 = vector.load %arg4[%c0_4, %c0_5] : memref<1x128xf32, #tpu.memory_space<vmem>>, vector<1x128xf32>
    %5 = vector.broadcast %4 : vector<1x128xf32> to vector<128x128xf32>
    %6 = arith.mulf %3, %5 : vector<128x128xf32>
    %c0_6 = arith.constant 0 : index
    %c0_7 = arith.constant 0 : index
    %7 = vector.load %arg5[%c0_6, %c0_7] : memref<1x128xf32, #tpu.memory_space<vmem>>, vector<1x128xf32>
    %8 = vector.broadcast %7 : vector<1x128xf32> to vector<128x128xf32>
    %9 = arith.addf %6, %8 : vector<128x128xf32>
    %cst_8 = arith.constant 3.000000e+00 : f32
    %10 = vector.broadcast %cst_8 : f32 to vector<128x128xf32>
    %11 = arith.addf %9, %10 : vector<128x128xf32>
    %cst_9 = arith.constant 0.000000e+00 : f32
    %cst_10 = arith.constant 6.000000e+00 : f32
    %12 = vector.broadcast %cst_9 : f32 to vector<128x128xf32>
    %13 = arith.maximumf %12, %11 : vector<128x128xf32>
    %14 = vector.broadcast %cst_10 : f32 to vector<128x128xf32>
    %15 = arith.minimumf %14, %13 : vector<128x128xf32>
    %16 = arith.mulf %9, %15 : vector<128x128xf32>
    %cst_11 = arith.constant 0.166666672 : f32
    %17 = vector.broadcast %cst_11 : f32 to vector<128x128xf32>
    %18 = arith.mulf %16, %17 : vector<128x128xf32>
    %19 = arith.truncf %18 : vector<128x128xf32> to vector<128x128xbf16>
    %c0_12 = arith.constant 0 : index
    %c0_13 = arith.constant 0 : index
    %c0_14 = arith.constant 0 : index
    %20 = vector.load %arg6[%c0_12, %c0_13, %c0_14] : memref<1x128x128xbf16, #tpu.memory_space<vmem>>, vector<1x128x128xbf16>
    %21 = vector.shape_cast %20 : vector<1x128x128xbf16> to vector<128x128xbf16>
    %22 = vector.shape_cast %19 : vector<128x128xbf16> to vector<1x128x128xbf16>
    tpu.vector_store %arg6[%c0_12, %c0_13, %c0_14], %22 {strides = array<i32>} : memref<1x128x128xbf16, #tpu.memory_space<vmem>>, vector<1x128x128xbf16>,
    return
  }
  func.func @transform_0(%arg0: i32, %arg1: i32) -> (i32, i32, i32) {
    %c0_i32 = arith.constant 0 : i32
    %c0_i32_0 = arith.constant 0 : i32
    return %arg0, %arg1, %c0_i32 : i32, i32, i32
  }
  func.func @transform_1(%arg0: i32, %arg1: i32) -> (i32, i32) {
    %c0_i32 = arith.constant 0 : i32
    %c0_i32_0 = arith.constant 0 : i32
    %c0_i32_1 = arith.constant 0 : i32
    return %c0_i32, %c0_i32_0 : i32, i32
  }
  func.func @transform_2(%arg0: i32, %arg1: i32) -> (i32, i32) {
    %c0_i32 = arith.constant 0 : i32
    %c0_i32_0 = arith.constant 0 : i32
    %c0_i32_1 = arith.constant 0 : i32
    return %c0_i32, %c0_i32_0 : i32, i32
  }
  func.func @transform_3(%arg0: i32, %arg1: i32) -> (i32, i32) {
    %c0_i32 = arith.constant 0 : i32
    %c0_i32_0 = arith.constant 0 : i32
    %c0_i32_1 = arith.constant 0 : i32
    return %c0_i32, %c0_i32_0 : i32, i32
  }
  func.func @transform_4(%arg0: i32, %arg1: i32) -> (i32, i32, i32) {
    %c0_i32 = arith.constant 0 : i32
    %c0_i32_0 = arith.constant 0 : i32
    return %arg0, %arg1, %c0_i32 : i32, i32, i32
  }
}

</mosaic_0001>

<llo_original>
// kernel: tpu_custom_call.1
$region0: #{tpu_custom_call.1}
  #allocation0 [shape = 'u32[]', space=smem, size = 0x4, offset = 0x4, fixed_abs, tag = 'smem constant byte address 0x4 - core index']
  #allocation1 [shape = 'u32[144,128]{1,0:T(1,128)}', space=vmem, size = 0x12000, scoped, tag = 'internal scratch']
  %s0 = inlined_call_operand.vmem [shape: bf16[1,128,27], index: 0, kind: input, shape index: {}]
  %s1 = inlined_call_operand.vmem [shape: bf16[27,128], index: 1, kind: input, shape index: {}]
  %s2 = inlined_call_operand.vmem [shape: f32[1,128], index: 2, kind: input, shape index: {}]
  %s3 = inlined_call_operand.vmem [shape: f32[1,128], index: 3, kind: input, shape index: {}]
  %s4 = inlined_call_operand.hbm [shape: bf16[1,128,128], index: 4, kind: output, shape index: {}]
  %s5 = sld [smem:[#allocation0]]
  $region26: #{tpu_custom_call.1} parent=0
    _
  %s7 = ssub.s32 1, %s5
  %s8 = scalar_select 0, %s7, %s5
  $region1: #{tpu_custom_call.1} parent=0
    #allocation2 [shape = 'u8[32768]{0}', space=vmem, size = 0x8000, scoped, tag = 'output window, operand 0, single buffered']
    #allocation3 [shape = 's32[1]{0}', space=sflag, size = 0x4, scoped, tag = 'scoped memory for tpu_custom_call.1']
    %9 = vsyncpa [#allocation3], 0
    // Predicated region
    $region2: #{tpu_custom_call.1} parent=1 // pred_check
      _
    $region3: #{tpu_custom_call.1} parent=1 // pred_check_branch
      %11 = sbr.rel (0) target = $region5
    $region4: #{tpu_custom_call.1} parent=1 // pred_region
      _
    $region5: #{tpu_custom_call.1} parent=1 // pred_fallthru
      _
    // Predicated region
    $region6: #{tpu_custom_call.1} parent=1 // pred_check
      _
    $region7: #{tpu_custom_call.1} parent=1 // pred_check_branch
      %13 = sbr.rel (0) target = $region9
    $region8: #{tpu_custom_call.1} parent=1 // pred_region
      _
    $region9: #{tpu_custom_call.1} parent=1 // pred_fallthru
      _
    // Predicated region
    $region10: #{tpu_custom_call.1} parent=1 // pred_check
      _
    $region11: #{tpu_custom_call.1} parent=1 // pred_check_branch
      %15 = sbr.rel (0) target = $region13
    $region12: #{tpu_custom_call.1} parent=1 // pred_region
      _
    $region13: #{tpu_custom_call.1} parent=1 // pred_fallthru
      _
    // Predicated region
    $region14: #{tpu_custom_call.1} parent=1 // pred_check
      _
    $region15: #{tpu_custom_call.1} parent=1 // pred_check_branch
      %17 = sbr.rel (0) target = $region17
    $region16: #{tpu_custom_call.1} parent=1 // pred_region
      _
    $region17: #{tpu_custom_call.1} parent=1 // pred_fallthru
      _
    %v19 = vld [vmem:[%s0] sm:$0xf]
    %v20 = vld [vmem:[%s0 + $0x4] sm:$0xf]
    %v21 = vld [vmem:[%s0 + $0x8] sm:$0xf]
    %v22 = vld [vmem:[%s0 + $0xc] sm:$0xf]
    %v23 = vld [vmem:[%s0 + $0x10] sm:$0xf]
    %v24 = vld [vmem:[%s0 + $0x14] sm:$0xf]
    %v25 = vld [vmem:[%s0 + $0x18] sm:$0xf]
    %v26 = vld [vmem:[%s0 + $0x1c] sm:$0xf]
    %v27 = vld [vmem:[%s0 + $0x20] sm:$0xf]
    %v28 = vld [vmem:[%s0 + $0x24] sm:$0xf]
    %v29 = vld [vmem:[%s0 + $0x28] sm:$0xf]
    %v30 = vld [vmem:[%s0 + $0x2c] sm:$0xf]
    %v31 = vld [vmem:[%s0 + $0x30] sm:$0xf]
    %v32 = vld [vmem:[%s0 + $0x34] sm:$0xf]
    %v33 = vld [vmem:[%s0 + $0x38] sm:$0xf]
    %v34 = vld [vmem:[%s0 + $0x3c] sm:$0xf]
    %v35 = vld [vmem:[%s1] sm:$0xf]
    %v36 = vld [vmem:[%s1 + $0x4] sm:$0xf]
    %v37 = vld [vmem:[%s1 + $0x8] sm:$0xf]
    %v38 = vld [vmem:[%s1 + $0xc] sm:$0x3]
    %v55 = vunpack.c.l.b16 %v19
    %v56 = vunpack.c.l.b16 %v20
    %v57 = vunpack.c.l.b16 %v21
    %v58 = vunpack.c.l.b16 %v22
    %v59 = vunpack.c.l.b16 %v23
    %v60 = vunpack.c.l.b16 %v24
    %v61 = vunpack.c.l.b16 %v25
    %v62 = vunpack.c.l.b16 %v26
    %v63 = vunpack.c.l.b16 %v27
    %v64 = vunpack.c.l.b16 %v28
    %v65 = vunpack.c.l.b16 %v29
    %v66 = vunpack.c.l.b16 %v30
    %v67 = vunpack.c.l.b16 %v31
    %v68 = vunpack.c.l.b16 %v32
    %v69 = vunpack.c.l.b16 %v33
    %v70 = vunpack.c.l.b16 %v34
    %v71 = vpack.c.b16 %v56, %v55
    %v72 = vpack.c.b16 %v58, %v57
    %v73 = vpack.c.b16 %v60, %v59
    %v74 = vpack.c.b16 %v62, %v61
    %v75 = vpack.c.b16 %v64, %v63
    %v76 = vpack.c.b16 %v66, %v65
    %v77 = vpack.c.b16 %v68, %v67
    %v78 = vpack.c.b16 %v70, %v69
    %v83 = vunpack.c.l.b16 %v35
    %v84 = vunpack.c.l.b16 %v36
    %v85 = vunpack.c.l.b16 %v37
    %v86 = vunpack.c.l.b16 %v38
    %v87 = vpack.c.b16 %v84, %v83
    %v88 = vpack.c.b16 %v86, %v85
    %vm90 = vcmask 220160
    %v92 = vsel %vm90, %v71, 0
    %v95 = vsel %vm90, %v72, 0
    %v98 = vsel %vm90, %v73, 0
    %v101 = vsel %vm90, %v74, 0
    %v104 = vsel %vm90, %v75, 0
    %v107 = vsel %vm90, %v76, 0
    %v110 = vsel %vm90, %v77, 0
    %v113 = vsel %vm90, %v78, 0
    %vm115 = vcmask 1044480
    %vm116 = vcmask 1045504
    %v117 = vsel %vm115, 4294967295, 65535
    %v118 = vsel %vm116, %v117, 0
    %v120 = vand.u32 %v88, %v118
    %122 = vmatprep.subr.bf16.mxu0 0
    %123 = vmatpush1.bf16.msra.mxu0 %v87
    %124 = vmatprep.subr.bf16.mxu0 0
    %125 = vmatpush1.bf16.msra.mxu0 %v120
    %126 = vmatprep.subr.bf16.mxu0 0
    %127 = vmatpush1.bf16.msra.mxu0 0
    %128 = vmatprep.subr.bf16.mxu0 0
    %129 = vmatpush1.bf16.msra.mxu0 0
    %130 = vmatprep.subr.bf16.mxu0 0
    %131 = vmatpush1.bf16.msra.mxu0 0
    %132 = vmatprep.subr.bf16.mxu0 0
    %133 = vmatpush1.bf16.msra.mxu0 0
    %134 = vmatprep.subr.bf16.mxu0 0
    %135 = vmatpush1.bf16.msra.mxu0 0
    %136 = vmatprep.subr.bf16.mxu0 0
    %137 = vmatpush1.bf16.msra.mxu0 0
    %138 = vmatprep.subr.bf16.mxu0 0
    %139 = vmatpush1.bf16.msra.mxu0 0
    %140 = vmatprep.subr.bf16.mxu0 0
    %141 = vmatpush1.bf16.msra.mxu0 0
    %142 = vmatprep.subr.bf16.mxu0 0
    %143 = vmatpush1.bf16.msra.mxu0 0
    %144 = vmatprep.subr.bf16.mxu0 0
    %145 = vmatpush1.bf16.msra.mxu0 0
    %146 = vmatprep.subr.bf16.mxu0 0
    %147 = vmatpush1.bf16.msra.mxu0 0
    %148 = vmatprep.subr.bf16.mxu0 0
    %149 = vmatpush1.bf16.msra.mxu0 0
    %150 = vmatprep.subr.bf16.mxu0 0
    %151 = vmatpush1.bf16.msra.mxu0 0
    %152 = vmatprep.subr.bf16.mxu0 0
    %153 = vmatpush1.bf16.msra.mxu0 0
    %154 = vmatprep.mubr.bf16.mxu0 0
    %155 = vmatmul.mubr.bf16.gmra.mrb[0].mxu0 %v92
    %v156 = vpop.f32.mrb[0].mxu0
    %v157 = vadd.f32 0.0, %v156
    %v158 = vpop.f32.mrb[0].mxu0
    %v159 = vpop.f32.mrb[0].mxu0
    %v160 = vadd.f32 0.0, %v159
    %v161 = vpop.f32.mrb[0].mxu0
    %162 = vmatprep.mubr.bf16.mxu0 0
    %163 = vmatmul.mubr.bf16.gmra.mrb[0].mxu0 %v95
    %v164 = vpop.f32.mrb[0].mxu0
    %v165 = vadd.f32 0.0, %v164
    %v166 = vpop.f32.mrb[0].mxu0
    %v167 = vpop.f32.mrb[0].mxu0
    %v168 = vadd.f32 0.0, %v167
    %v169 = vpop.f32.mrb[0].mxu0
    %170 = vmatprep.mubr.bf16.mxu0 0
    %171 = vmatmul.mubr.bf16.gmra.mrb[0].mxu0 %v98
    %v172 = vpop.f32.mrb[0].mxu0
    %v173 = vadd.f32 0.0, %v172
    %v174 = vpop.f32.mrb[0].mxu0
    %v175 = vpop.f32.mrb[0].mxu0
    %v176 = vadd.f32 0.0, %v175
    %v177 = vpop.f32.mrb[0].mxu0
    %178 = vmatprep.mubr.bf16.mxu0 0
    %179 = vmatmul.mubr.bf16.gmra.mrb[0].mxu0 %v101
    %v180 = vpop.f32.mrb[0].mxu0
    %v181 = vadd.f32 0.0, %v180
    %v182 = vpop.f32.mrb[0].mxu0
    %v183 = vpop.f32.mrb[0].mxu0
    %v184 = vadd.f32 0.0, %v183
    %v185 = vpop.f32.mrb[0].mxu0
    %186 = vmatprep.mubr.bf16.mxu0 0
    %187 = vmatmul.mubr.bf16.gmra.mrb[0].mxu0 %v104
    %v188 = vpop.f32.mrb[0].mxu0
    %v189 = vadd.f32 0.0, %v188
    %v190 = vpop.f32.mrb[0].mxu0
    %v191 = vpop.f32.mrb[0].mxu0
    %v192 = vadd.f32 0.0, %v191
    %v193 = vpop.f32.mrb[0].mxu0
    %194 = vmatprep.mubr.bf16.mxu0 0
    %195 = vmatmul.mubr.bf16.gmra.mrb[0].mxu0 %v107
    %v196 = vpop.f32.mrb[0].mxu0
    %v197 = vadd.f32 0.0, %v196
    %v198 = vpop.f32.mrb[0].mxu0
    %v199 = vpop.f32.mrb[0].mxu0
    %v200 = vadd.f32 0.0, %v199
    %v201 = vpop.f32.mrb[0].mxu0
    %202 = vmatprep.mubr.bf16.mxu0 0
    %203 = vmatmul.mubr.bf16.gmra.mrb[0].mxu0 %v110
    %v204 = vpop.f32.mrb[0].mxu0
    %v205 = vadd.f32 0.0, %v204
    %v206 = vpop.f32.mrb[0].mxu0
    %v207 = vpop.f32.mrb[0].mxu0
    %v208 = vadd.f32 0.0, %v207
    %v209 = vpop.f32.mrb[0].mxu0
    %210 = vmatprep.mubr.bf16.mxu0 0
    %211 = vmatmul.mubr.bf16.gmra.mrb[0].mxu0 %v113
    %v212 = vpop.f32.mrb[0].mxu0
    %v213 = vadd.f32 0.0, %v212
    %v214 = vpop.f32.mrb[0].mxu0
    %v215 = vpop.f32.mrb[0].mxu0
    %v216 = vadd.f32 0.0, %v215
    %v217 = vpop.f32.mrb[0].mxu0
    %218 = vdwg.mxu0
    %v219 = vld [vmem:[%s2] sm:$0x1]
    %v221 = vlaneseq
    %v222 = vshrl.u32 %v221, 7
    %v223 = vsub.s32 0, %v222
    %v224 = vrot.slane %v219, %v223
    %v226 = vmul.f32 %v157, %v224
    %v227 = vmul.f32 %v160, %v224
    %v228 = vmul.f32 %v165, %v224
    %v229 = vmul.f32 %v168, %v224
    %v230 = vmul.f32 %v173, %v224
    %v231 = vmul.f32 %v176, %v224
    %v232 = vmul.f32 %v181, %v224
    %v233 = vmul.f32 %v184, %v224
    %v234 = vmul.f32 %v189, %v224
    %v235 = vmul.f32 %v192, %v224
    %v236 = vmul.f32 %v197, %v224
    %v237 = vmul.f32 %v200, %v224
    %v238 = vmul.f32 %v205, %v224
    %v239 = vmul.f32 %v208, %v224
    %v240 = vmul.f32 %v213, %v224
    %v241 = vmul.f32 %v216, %v224
    %v242 = vld [vmem:[%s3] sm:$0x1]
    %v244 = vlaneseq
    %v245 = vshrl.u32 %v244, 7
    %v246 = vsub.s32 0, %v245
    %v247 = vrot.slane %v242, %v246
    %v249 = vadd.f32 %v226, %v247
    %v250 = vadd.f32 %v227, %v247
    %v251 = vadd.f32 %v228, %v247
    %v252 = vadd.f32 %v229, %v247
    %v253 = vadd.f32 %v230, %v247
    %v254 = vadd.f32 %v231, %v247
    %v255 = vadd.f32 %v232, %v247
    %v256 = vadd.f32 %v233, %v247
    %v257 = vadd.f32 %v234, %v247
    %v258 = vadd.f32 %v235, %v247
    %v259 = vadd.f32 %v236, %v247
    %v260 = vadd.f32 %v237, %v247
    %v261 = vadd.f32 %v238, %v247
    %v262 = vadd.f32 %v239, %v247
    %v263 = vadd.f32 %v240, %v247
    %v264 = vadd.f32 %v241, %v247
    %v265 = vadd.f32 %v249, 3.0
    %v266 = vadd.f32 %v250, 3.0
    %v267 = vadd.f32 %v251, 3.0
    %v268 = vadd.f32 %v252, 3.0
    %v269 = vadd.f32 %v253, 3.0
    %v270 = vadd.f32 %v254, 3.0
    %v271 = vadd.f32 %v255, 3.0
    %v272 = vadd.f32 %v256, 3.0
    %v273 = vadd.f32 %v257, 3.0
    %v274 = vadd.f32 %v258, 3.0
    %v275 = vadd.f32 %v259, 3.0
    %v276 = vadd.f32 %v260, 3.0
    %v277 = vadd.f32 %v261, 3.0
    %v278 = vadd.f32 %v262, 3.0
    %v279 = vadd.f32 %v263, 3.0
    %v280 = vadd.f32 %v264, 3.0
    %v281 = vmax.f32 %v265, 0.0
    %v282 = vmax.f32 %v266, 0.0
    %v283 = vmax.f32 %v267, 0.0
    %v284 = vmax.f32 %v268, 0.0
    %v285 = vmax.f32 %v269, 0.0
    %v286 = vmax.f32 %v270, 0.0
    %v287 = vmax.f32 %v271, 0.0
    %v288 = vmax.f32 %v272, 0.0
    %v289 = vmax.f32 %v273, 0.0
    %v290 = vmax.f32 %v274, 0.0
    %v291 = vmax.f32 %v275, 0.0
    %v292 = vmax.f32 %v276, 0.0
    %v293 = vmax.f32 %v277, 0.0
    %v294 = vmax.f32 %v278, 0.0
    %v295 = vmax.f32 %v279, 0.0
    %v296 = vmax.f32 %v280, 0.0
    %v297 = vmin.f32 %v281, 6.0
    %v298 = vmin.f32 %v282, 6.0
    %v299 = vmin.f32 %v283, 6.0
    %v300 = vmin.f32 %v284, 6.0
    %v301 = vmin.f32 %v285, 6.0
    %v302 = vmin.f32 %v286, 6.0
    %v303 = vmin.f32 %v287, 6.0
    %v304 = vmin.f32 %v288, 6.0
    %v305 = vmin.f32 %v289, 6.0
    %v306 = vmin.f32 %v290, 6.0
    %v307 = vmin.f32 %v291, 6.0
    %v308 = vmin.f32 %v292, 6.0
    %v309 = vmin.f32 %v293, 6.0
    %v310 = vmin.f32 %v294, 6.0
    %v311 = vmin.f32 %v295, 6.0
    %v312 = vmin.f32 %v296, 6.0
    %v313 = vmul.f32 %v249, %v297
    %v314 = vmul.f32 %v250, %v298
    %v315 = vmul.f32 %v251, %v299
    %v316 = vmul.f32 %v252, %v300
    %v317 = vmul.f32 %v253, %v301
    %v318 = vmul.f32 %v254, %v302
    %v319 = vmul.f32 %v255, %v303
    %v320 = vmul.f32 %v256, %v304
    %v321 = vmul.f32 %v257, %v305
    %v322 = vmul.f32 %v258, %v306
    %v323 = vmul.f32 %v259, %v307
    %v324 = vmul.f32 %v260, %v308
    %v325 = vmul.f32 %v261, %v309
    %v326 = vmul.f32 %v262, %v310
    %v327 = vmul.f32 %v263, %v311
    %v328 = vmul.f32 %v264, %v312
    %v329 = vmul.f32 %v313, 0.16666667
    %v330 = vmul.f32 %v314, 0.16666667
    %v331 = vmul.f32 %v315, 0.16666667
    %v332 = vmul.f32 %v316, 0.16666667
    %v333 = vmul.f32 %v317, 0.16666667
    %v334 = vmul.f32 %v318, 0.16666667
    %v335 = vmul.f32 %v319, 0.16666667
    %v336 = vmul.f32 %v320, 0.16666667
    %v337 = vmul.f32 %v321, 0.16666667
    %v338 = vmul.f32 %v322, 0.16666667
    %v339 = vmul.f32 %v323, 0.16666667
    %v340 = vmul.f32 %v324, 0.16666667
    %v341 = vmul.f32 %v325, 0.16666667
    %v342 = vmul.f32 %v326, 0.16666667
    %v343 = vmul.f32 %v327, 0.16666667
    %v344 = vmul.f32 %v328, 0.16666667
    %v345 = vpack.c.bf16 %v330, %v329
    %v346 = vpack.c.bf16 %v332, %v331
    %v347 = vpack.c.bf16 %v334, %v333
    %v348 = vpack.c.bf16 %v336, %v335
    %v349 = vpack.c.bf16 %v338, %v337
    %v350 = vpack.c.bf16 %v340, %v339
    %v351 = vpack.c.bf16 %v342, %v341
    %v352 = vpack.c.bf16 %v344, %v343
    %v361 = vunpack.c.l.b16 %v345
    %v362 = vunpack.c.h.b16 %v345
    %v363 = vunpack.c.l.b16 %v346
    %v364 = vunpack.c.h.b16 %v346
    %v365 = vunpack.c.l.b16 %v347
    %v366 = vunpack.c.h.b16 %v347
    %v367 = vunpack.c.l.b16 %v348
    %v368 = vunpack.c.h.b16 %v348
    %v369 = vunpack.c.l.b16 %v349
    %v370 = vunpack.c.h.b16 %v349
    %v371 = vunpack.c.l.b16 %v350
    %v372 = vunpack.c.h.b16 %v350
    %v373 = vunpack.c.l.b16 %v351
    %v374 = vunpack.c.h.b16 %v351
    %v375 = vunpack.c.l.b16 %v352
    %v376 = vunpack.c.h.b16 %v352
    %v377 = vpack.c.b16 %v361, %v361
    %v378 = vpack.c.b16 %v362, %v362
    %v379 = vpack.c.b16 %v363, %v363
    %v380 = vpack.c.b16 %v364, %v364
    %v381 = vpack.c.b16 %v365, %v365
    %v382 = vpack.c.b16 %v366, %v366
    %v383 = vpack.c.b16 %v367, %v367
    %v384 = vpack.c.b16 %v368, %v368
    %v385 = vpack.c.b16 %v369, %v369
    %v386 = vpack.c.b16 %v370, %v370
    %v387 = vpack.c.b16 %v371, %v371
    %v388 = vpack.c.b16 %v372, %v372
    %v389 = vpack.c.b16 %v373, %v373
    %v390 = vpack.c.b16 %v374, %v374
    %v391 = vpack.c.b16 %v375, %v375
    %v392 = vpack.c.b16 %v376, %v376
    %409 = vst [vmem:[#allocation2] sm:$0xf] %v377
    %410 = vst [vmem:[#allocation2 + $0x4] sm:$0xf] %v378
    %411 = vst [vmem:[#allocation2 + $0x8] sm:$0xf] %v379
    %412 = vst [vmem:[#allocation2 + $0xc] sm:$0xf] %v380
    %413 = vst [vmem:[#allocation2 + $0x10] sm:$0xf] %v381
    %414 = vst [vmem:[#allocation2 + $0x14] sm:$0xf] %v382
    %415 = vst [vmem:[#allocation2 + $0x18] sm:$0xf] %v383
    %416 = vst [vmem:[#allocation2 + $0x1c] sm:$0xf] %v384
    %417 = vst [vmem:[#allocation2 + $0x20] sm:$0xf] %v385
    %418 = vst [vmem:[#allocation2 + $0x24] sm:$0xf] %v386
    %419 = vst [vmem:[#allocation2 + $0x28] sm:$0xf] %v387
    %420 = vst [vmem:[#allocation2 + $0x2c] sm:$0xf] %v388
    %421 = vst [vmem:[#allocation2 + $0x30] sm:$0xf] %v389
    %422 = vst [vmem:[#allocation2 + $0x34] sm:$0xf] %v390
    %423 = vst [vmem:[#allocation2 + $0x38] sm:$0xf] %v391
    %424 = vst [vmem:[#allocation2 + $0x3c] sm:$0xf] %v392
    // Predicated region
    $region18: #{tpu_custom_call.1} parent=1 // pred_check
      _
    $region19: #{tpu_custom_call.1} parent=1 // pred_check_branch
      %426 = sbr.rel (0) target = $region21
    $region20: #{tpu_custom_call.1} parent=1 // pred_region
      %s428 = ssub.s32 1024, 1024
      %429 = vsyncadd [#allocation3], %s428
      %s430 = sshll.u32 [#allocation2], 4
      %s431 = int_to_ptr.vmem [resolvable:$true] %s430
      %436 = dma.vmem_to_hbm [thread:$0]  %s431, 1024, %s4, [#allocation3], 64, 64, 4
    $region21: #{tpu_custom_call.1} parent=1 // pred_fallthru
      _
    // Predicated region
    $region22: #{tpu_custom_call.1} parent=1 // pred_check
      _
    $region23: #{tpu_custom_call.1} parent=1 // pred_check_branch
      %438 = sbr.rel (0) target = $region25
    $region24: #{tpu_custom_call.1} parent=1 // pred_region
      %439 = dma.done [#allocation3], 1024
    $region25: #{tpu_custom_call.1} parent=1 // pred_fallthru
      _
    %440 = vsyncpa [#allocation3], 1

</llo_original>
